<compile_context>
chip_gen: v5e
topology: v5e:2x2
jax: 0.10.0
libtpu: 0.0.40
codegen_flags: <defaults>
</compile_context>

<pallas_src>
import functools

import jax
import jax.numpy as jnp
from jax.experimental import pallas as pl
from jax.experimental.pallas import tpu as pltpu

NEG = -1e30  # stands in for -inf; exp(NEG - max) underflows to exactly 0


def _clip_loss_kernel(TN, cast_bf16,
                      scale_ref,   # SMEM (1,)         f32  (scalar prefetch)
                      gnn_ref,     # VMEM (TB, Np, D)  input dtype
                      txt_ref,     # VMEM (TB, Sp, D)  input dtype (NOT transposed)
                      s2c_ref,     # VMEM (TB, 1, Sp)  i32  seq_to_coords, -1 == masked
                      c2s_ref,     # VMEM (TB, Np, 1)  i32  coords_to_seq, -1 == masked
                      out_ref):    # VMEM (1, 8, 128)  f32  per-grid-step partial sums
    scale = scale_ref[0]
    TB, Np, _ = gnn_ref.shape
    Sp = txt_ref.shape[1]
    NC = Np // TN                      # static number of N-chunks

    s_iota = jax.lax.broadcasted_iota(jnp.int32, (TN, Sp), 1)
    n_iota0 = jax.lax.broadcasted_iota(jnp.int32, (TN, Sp), 0)

    def batch_body(i, carry):
        loss1_t, loss2_t, corr1_t, cnt1_t, corr2_t, cnt2_t = carry

        s2c = s2c_ref[i]                               # (1, Sp) i32, -1 == masked
        svalid = s2c >= 0                              # seq_loss_mask
        cnt1 = jnp.sum(svalid.astype(jnp.float32))

        def chunk_body(nc, ch):
            m1, l1, tgt1, loss2_num, cnt2, corr2 = ch
            start = pl.multiple_of(nc * TN, TN)

            g = gnn_ref[i, pl.ds(start, TN), :]        # (TN, D)
            t = txt_ref[i]                             # (Sp, D), lane-dense
            if cast_bf16:
                g = g.astype(jnp.bfloat16)
                t = t.astype(jnp.bfloat16)

            # hot path: contract last dims directly on the MXU ('nd,sd->ns')
            logits = scale * jax.lax.dot_general(
                g, t, (((1,), (1,)), ((), ())),
                preferred_element_type=jnp.float32)    # (TN, Sp) f32

            c2s = c2s_ref[i, pl.ds(start, TN), :]      # (TN, 1) i32, -1 == masked
            cvalid = c2s >= 0                          # coords_loss_mask (chunk)
            masked = jnp.where(cvalid & svalid, logits, NEG)

            # -- direction 1: online softmax over coords (rows) per sequence column
            cm = jnp.max(masked, axis=0, keepdims=True)            # (1, Sp)
            m_new = jnp.maximum(m1, cm)
            l1 = l1 * jnp.exp(m1 - m_new) + jnp.sum(
                jnp.exp(masked - m_new), axis=0, keepdims=True)
            hit1 = (n_iota0 + start) == s2c
            tgt1 = tgt1 + jnp.sum(jnp.where(hit1, masked, 0.0),
                                  axis=0, keepdims=True)
            m1 = m_new

            # -- direction 2: per valid coord row, CE over sequence (chunk-local)
            m2 = jnp.max(masked, axis=1, keepdims=True)            # (TN, 1)
            lse2 = m2 + jnp.log(jnp.sum(jnp.exp(masked - m2),
                                        axis=1, keepdims=True))
            tgt2 = jnp.sum(jnp.where(s_iota == c2s, masked, 0.0),
                           axis=1, keepdims=True)
            ce2 = lse2 - tgt2
            loss2_num = loss2_num + jnp.sum(jnp.where(cvalid, ce2, 0.0))
            cnt2 = cnt2 + jnp.sum(cvalid.astype(jnp.float32))
            corr2 = corr2 + jnp.sum(jnp.where(cvalid & (tgt2 >= m2), 1.0, 0.0))
            return (m1, l1, tgt1, loss2_num, cnt2, corr2)

        zero = jnp.zeros((), jnp.float32)
        ch0 = (jnp.full((1, Sp), NEG, jnp.float32),   # running max
               jnp.zeros((1, Sp), jnp.float32),       # running sum-exp
               jnp.zeros((1, Sp), jnp.float32),       # target logit
               zero, zero, zero)
        m1, l1, tgt1, loss2_num, cnt2, corr2 = jax.lax.fori_loop(
            0, NC, chunk_body, ch0)

        # finalize direction 1 (l1 > 0 always: masked rows contribute exp(0)=1
        # when everything is NEG, so log() never sees 0)
        lse1 = m1 + jnp.log(l1)
        ce1 = lse1 - tgt1
        loss1 = jnp.sum(jnp.where(svalid, ce1, 0.0)) / jnp.maximum(cnt1, 1.0)
        corr1 = jnp.sum(jnp.where(svalid & (tgt1 >= m1), 1.0, 0.0))
        loss2 = loss2_num / jnp.maximum(cnt2, 1.0)

        return (loss1_t + loss1, loss2_t + loss2, corr1_t + corr1,
                cnt1_t + cnt1, corr2_t + corr2, cnt2_t + cnt2)

    zero = jnp.zeros((), jnp.float32)
    totals = jax.lax.fori_loop(0, TB, batch_body, (zero,) * 6, unroll=True)

    # Pack the 6 partial sums into row 0 of a lane-dense (8, 128) tile.
    lane = jax.lax.broadcasted_iota(jnp.int32, (8, 128), 1)
    row0 = jax.lax.broadcasted_iota(jnp.int32, (8, 128), 0) == 0
    tile = jnp.zeros((8, 128), jnp.float32)
    for k, v in enumerate(totals):
        tile = jnp.where(row0 & (lane == k), v, tile)
    out_ref[0] = tile


def _round_up(x, m):
    return ((x + m - 1) // m) * m


def _choose_tb(B, Np, D, Sp, TN, itemsize):
    """Generation-aware choice of batch elements per grid step + VMEM limit."""
    try:
        vmem_phys = int(pltpu.get_tpu_info().vmem_capacity_bytes)
    except Exception:
        vmem_phys = 64 * 1024 * 1024
    small_vmem = vmem_phys <= 64 * 1024 * 1024          # v7x-class chip
    budget = (20 if small_vmem else 56) * 1024 * 1024   # use v5e/v6e's larger VMEM
    limit = (48 if small_vmem else 96) * 1024 * 1024

    # per batch element: double-buffered input blocks (incl. tile padding)
    per_b = 2 * (Np * D + Sp * D) * itemsize            # gnn + text
    per_b += 2 * (8 * Sp + Np * 128) * 4                # s2c row + c2s column
    # fixed: live f32 (TN, Sp) temporaries + online-softmax carry + output tile
    fixed = 12 * TN * Sp * 4 + 2 * 8 * 128 * 4

    tb = max(1, min(B, (budget - fixed) // max(per_b, 1)))
    tb = int(min(tb, 8))
    if small_vmem:
        tb = min(tb, max(1, B // 2))   # keep G >= 2 so the 2nd TensorCore has work
    while B % tb != 0:                 # divisor of B -> no batch padding / jnp.pad
        tb -= 1
    return int(tb), limit


def clip_selfsup_loss(gnn_features, text_features, logit_scale,
                      seq_to_coords, seq_loss_mask, coords_to_seq, coords_loss_mask,
                      use_bf16_matmul=False):
    B, N, D = gnn_features.shape
    S = text_features.shape[1]
    in_dtype = gnn_features.dtype
    itemsize = jnp.dtype(in_dtype).itemsize

    # ---- lane-dense padding: S -> multiple of 128 lanes, N -> multiple of chunk ----
    Sp = _round_up(max(S, 1), 128)
    TN_MAX = 256
    if N <= TN_MAX:
        Np = _round_up(max(N, 1), 8)
        TN = Np
    else:
        TN = TN_MAX
        Np = _round_up(N, TN)

    gnn = gnn_features
    txt = text_features
    if Np != N:
        gnn = jnp.pad(gnn, ((0, 0), (0, Np - N), (0, 0)))
    if Sp != S:
        txt = jnp.pad(txt, ((0, 0), (0, Sp - S), (0, 0)))

    # Fold loss masks into the index arrays: -1 marks a masked-out position
    # (padded positions are automatically masked the same way).
    s2c_enc = jnp.where(seq_loss_mask, seq_to_coords.astype(jnp.int32), -1)
    c2s_enc = jnp.where(coords_loss_mask, coords_to_seq.astype(jnp.int32), -1)
    if Sp != S:
        s2c_enc = jnp.pad(s2c_enc, ((0, 0), (0, Sp - S)), constant_values=-1)
    if Np != N:
        c2s_enc = jnp.pad(c2s_enc, ((0, 0), (0, Np - N)), constant_values=-1)
    s2c_enc = s2c_enc.reshape(B, 1, Sp)
    # TODO(synk): c2s kept as an (Np, 1) column block (lane-padded in VMEM) to avoid
    # an in-kernel int32 row->column relayout; revisit with a lane-dense (1, Np) layout.
    c2s_enc = c2s_enc.reshape(B, Np, 1)

    scale = jnp.asarray(logit_scale, jnp.float32).reshape(1)

    TB, vmem_limit = _choose_tb(B, Np, D, Sp, TN, itemsize)
    G = B // TB

    cost = pl.CostEstimate(
        flops=int(2 * B * Np * Sp * D),
        transcendentals=int(2 * B * Np * Sp),
        bytes_accessed=int((gnn.size + txt.size) * itemsize
                           + (s2c_enc.size + c2s_enc.size) * 4
                           + G * 8 * 128 * 4),
    )

    kernel = functools.partial(_clip_loss_kernel, TN, bool(use_bf16_matmul))

    grid_spec = pltpu.PrefetchScalarGridSpec(
        num_scalar_prefetch=1,
        grid=(G,),
        in_specs=[
            pl.BlockSpec((TB, Np, D), lambda g, sc: (g, 0, 0)),
            pl.BlockSpec((TB, Sp, D), lambda g, sc: (g, 0, 0)),
            pl.BlockSpec((TB, 1, Sp), lambda g, sc: (g, 0, 0)),
            pl.BlockSpec((TB, Np, 1), lambda g, sc: (g, 0, 0)),
        ],
        out_specs=pl.BlockSpec((1, 8, 128), lambda g, sc: (g, 0, 0)),
    )

    partials = pl.pallas_call(
        kernel,
        out_shape=jax.ShapeDtypeStruct((G, 8, 128), jnp.float32),
        grid_spec=grid_spec,
        compiler_params=pltpu.CompilerParams(
            dimension_semantics=("parallel",),
            vmem_limit_bytes=vmem_limit,
        ),
        cost_estimate=cost,
    )(scale, gnn, txt, s2c_enc, c2s_enc)

    sums = jnp.sum(partials[:, 0, :6], axis=0)   # (6,)
    loss = (sums[0] + sums[1]) / (2.0 * B)
    acc1 = sums[2] / jnp.maximum(sums[3], 1.0)
    acc2 = sums[4] / jnp.maximum(sums[5], 1.0)
    acc = 0.5 * (acc1 + acc2)
    return loss, acc


def reference_loss(gnn, text, logit_scale, s2c, smask, c2s, cmask):
    """Pure-JAX mirror of the PyTorch forward (for verification)."""
    B = gnn.shape[0]
    out = logit_scale * jnp.einsum('bnd,bsd->bns', gnn, text,
                                   precision=jax.lax.Precision.HIGHEST)
    out = jnp.where(cmask[:, :, None], out, -jnp.inf)
    out = jnp.where(smask[:, None, :], out, -jnp.inf)

    def sub(logits, idx, mask):
        lse = jax.scipy.special.logsumexp(logits, axis=-1)
        tgt = jnp.take_along_axis(logits, idx[..., None], axis=-1)[..., 0]
        ce = lse - tgt
        w = mask.sum(axis=1, keepdims=True).astype(jnp.float32)
        loss = jnp.sum(jnp.where(mask, ce / jnp.maximum(w, 1.0), 0.0)) / B
        amax = jnp.argmax(logits, axis=-1)
        correct = jnp.where(mask, (amax == idx).astype(jnp.float32), 0.0)
        acc = correct.sum() / jnp.maximum(mask.sum(), 1)
        return loss, acc

    l1, a1 = sub(jnp.transpose(out, (0, 2, 1)), s2c, smask)
    l2, a2 = sub(out, c2s, cmask)
    return (l1 + l2) / 2.0, (a1 + a2) / 2.0


if __name__ == "__main__":
    key = jax.random.PRNGKey(0)
    B, N, S, D = 2, 16, 8, 32
    k1, k2, k3, k4 = jax.random.split(key, 4)

    gnn = jax.random.normal(k1, (B, N, D), jnp.float32)
    text = jax.random.normal(k2, (B, S, D), jnp.float32)
    logit_scale = jnp.float32(0.25)

    # prefix-valid masks; targets only point at valid positions
    n_valid_coords = jnp.array([12, 10], jnp.int32)
    n_valid_seq = jnp.array([6, 7], jnp.int32)
    coords_loss_mask = jnp.arange(N)[None, :] < n_valid_coords[:, None]   # (B, N) bool
    seq_loss_mask = jnp.arange(S)[None, :] < n_valid_seq[:, None]         # (B, S) bool
    seq_to_coords = jax.random.randint(k3, (B, S), 0, 10)                 # (B, S) int
    coords_to_seq = jax.random.randint(k4, (B, N), 0, 6)                  # (B, N) int

    loss, acc = clip_selfsup_loss(gnn, text, logit_scale, seq_to_coords,
                                  seq_loss_mask, coords_to_seq, coords_loss_mask)
    loss, acc = jax.block_until_ready((loss, acc))

    ref_loss, ref_acc = reference_loss(gnn, text, logit_scale, seq_to_coords,
                                       seq_loss_mask, coords_to_seq, coords_loss_mask)

    assert jnp.allclose(loss, ref_loss, rtol=1e-3, atol=1e-3), (loss, ref_loss)
    assert jnp.allclose(acc, ref_acc, rtol=1e-5, atol=1e-5), (acc, ref_acc)
    print("KERNEL_OK")
</pallas_src>

<mosaic_0001>
module attributes {stable_mosaic.version = 11 : i64} {
  func.func @_clip_loss_kernel(%arg0: i32, %arg1: memref<1xf32, #tpu.memory_space<smem>>, %arg2: memref<1x16x32xf32, #tpu.memory_space<vmem>>, %arg3: memref<1x128x32xf32, #tpu.memory_space<vmem>>, %arg4: memref<1x1x128xi32, #tpu.memory_space<vmem>>, %arg5: memref<1x16x1xi32, #tpu.memory_space<vmem>>, %arg6: memref<1x8x128xf32, #tpu.memory_space<vmem>>) attributes {dimension_semantics = [#tpu.dimension_semantics<parallel>], iteration_bounds = array<i64: 2>, scalar_prefetch = 1 : i64, scratch_operands = 0 : i64, tpu.core_type = #tpu.core_type<tc>, window_params = [{transform_indices = @transform_0, window_bounds = array<i64: 1, 16, 32>}, {transform_indices = @transform_1, window_bounds = array<i64: 1, 128, 32>}, {transform_indices = @transform_2, window_bounds = array<i64: 1, 1, 128>}, {transform_indices = @transform_3, window_bounds = array<i64: 1, 16, 1>}, {transform_indices = @transform_4, window_bounds = array<i64: 1, 8, 128>}]} {
    %c0 = arith.constant 0 : index
    %0 = memref.load %arg1[%c0] : memref<1xf32, #tpu.memory_space<smem>>
    %1 = tpu.iota {dimensions = array<i32: 1>} : vector<16x128xi32>
    %2 = tpu.iota {dimensions = array<i32: 0>} : vector<16x128xi32>
    %cst = arith.constant 0.000000e+00 : f32
    %cst_0 = arith.constant 0.000000e+00 : f32
    %cst_1 = arith.constant 0.000000e+00 : f32
    %cst_2 = arith.constant 0.000000e+00 : f32
    %cst_3 = arith.constant 0.000000e+00 : f32
    %cst_4 = arith.constant 0.000000e+00 : f32
    %c0_i32 = arith.constant 0 : i32
    %3 = arith.index_cast %c0_i32 : i32 to index
    %c0_5 = arith.constant 0 : index
    %c0_6 = arith.constant 0 : index
    %4 = vector.load %arg4[%3, %c0_5, %c0_6] : memref<1x1x128xi32, #tpu.memory_space<vmem>>, vector<1x1x128xi32>
    %5 = vector.shape_cast %4 : vector<1x1x128xi32> to vector<1x128xi32>
    %c0_i32_7 = arith.constant 0 : i32
    %6 = vector.broadcast %c0_i32_7 : i32 to vector<1x128xi32>
    %7 = arith.cmpi sge, %5, %6 : vector<1x128xi32>
    %8 = arith.extui %7 : vector<1x128xi1> to vector<1x128xi32>
    %9 = arith.sitofp %8 : vector<1x128xi32> to vector<1x128xf32>
    %10 = vector.shape_cast %9 : vector<1x128xf32> to vector<1x1x128xf32>
    %cst_8 = arith.constant dense<0.000000e+00> : vector<1xf32>
    %11 = vector.multi_reduction <add>, %10, %cst_8 [1, 2] : vector<1x1x128xf32> to vector<1xf32>
    %12 = vector.shape_cast %11 : vector<1xf32> to vector<1x1x1xf32>
    %13 = vector.extract %12[0, 0, 0] : f32 from vector<1x1x1xf32>
    %cst_9 = arith.constant -1.000000e+30 : f32
    %14 = vector.broadcast %cst_9 : f32 to vector<1x128xf32>
    %cst_10 = arith.constant 0.000000e+00 : f32
    %15 = vector.broadcast %cst_10 : f32 to vector<1x128xf32>
    %cst_11 = arith.constant 0.000000e+00 : f32
    %16 = vector.broadcast %cst_11 : f32 to vector<1x128xf32>
    %cst_12 = arith.constant 0.000000e+00 : f32
    %cst_13 = arith.constant 0.000000e+00 : f32
    %cst_14 = arith.constant 0.000000e+00 : f32
    %c0_i32_15 = arith.constant 0 : i32
    %c16_i32 = arith.constant 16 : i32
    %17 = arith.muli %c0_i32_15, %c16_i32 : i32
    %18 = tpu.assume_multiple %17, 16 : i32
    %19 = arith.index_cast %c0_i32 : i32 to index
    %20 = arith.index_cast %18 : i32 to index
    %c0_16 = arith.constant 0 : index
    %21 = vector.load %arg2[%19, %20, %c0_16] : memref<1x16x32xf32, #tpu.memory_space<vmem>>, vector<1x16x32xf32>
    %22 = vector.shape_cast %21 : vector<1x16x32xf32> to vector<16x32xf32>
    %23 = arith.index_cast %c0_i32 : i32 to index
    %c0_17 = arith.constant 0 : index
    %c0_18 = arith.constant 0 : index
    %24 = vector.load %arg3[%23, %c0_17, %c0_18] : memref<1x128x32xf32, #tpu.memory_space<vmem>>, vector<1x128x32xf32>
    %25 = vector.shape_cast %24 : vector<1x128x32xf32> to vector<128x32xf32>
    %cst_19 = arith.constant dense<0.000000e+00> : vector<16x128xf32>
    %26 = tpu.matmul %22, %25, %cst_19 {dimension_numbers = #tpu.dot_dimension_numbers<[1], [1], [0], [0], [0, 0, 1, 0], [], []>} : vector<16x32xf32>, vector<128x32xf32>, vector<16x128xf32> -> vector<16x128xf32>
    %27 = vector.broadcast %0 : f32 to vector<16x128xf32>
    %28 = arith.mulf %27, %26 : vector<16x128xf32>
    %29 = arith.index_cast %c0_i32 : i32 to index
    %30 = arith.index_cast %18 : i32 to index
    %c0_20 = arith.constant 0 : index
    %31 = vector.load %arg5[%29, %30, %c0_20] : memref<1x16x1xi32, #tpu.memory_space<vmem>>, vector<1x16x1xi32>
    %32 = vector.shape_cast %31 : vector<1x16x1xi32> to vector<16x1xi32>
    %c0_i32_21 = arith.constant 0 : i32
    %33 = vector.broadcast %c0_i32_21 : i32 to vector<16x1xi32>
    %34 = arith.cmpi sge, %32, %33 : vector<16x1xi32>
    %35 = vector.broadcast %34 : vector<16x1xi1> to vector<16x128xi1>
    %36 = vector.broadcast %7 : vector<1x128xi1> to vector<16x128xi1>
    %37 = arith.andi %35, %36 : vector<16x128xi1>
    %cst_22 = arith.constant -1.000000e+30 : f32
    %38 = vector.broadcast %cst_22 : f32 to vector<16x128xf32>
    %39 = arith.select %37, %28, %38 : vector<16x128xi1>, vector<16x128xf32>
    %cst_23 = arith.constant dense<0xFF800000> : vector<128xf32>
    %40 = vector.multi_reduction <maximumf>, %39, %cst_23 [0] : vector<16x128xf32> to vector<128xf32>
    %41 = vector.shape_cast %40 : vector<128xf32> to vector<1x128xf32>
    %42 = arith.maximumf %14, %41 : vector<1x128xf32>
    %43 = arith.subf %14, %42 : vector<1x128xf32>
    %44 = math.exp %43 : vector<1x128xf32>
    %45 = arith.mulf %15, %44 : vector<1x128xf32>
    %46 = vector.broadcast %42 : vector<1x128xf32> to vector<16x128xf32>
    %47 = arith.subf %39, %46 : vector<16x128xf32>
    %48 = math.exp %47 : vector<16x128xf32>
    %cst_24 = arith.constant dense<0.000000e+00> : vector<128xf32>
    %49 = vector.multi_reduction <add>, %48, %cst_24 [0] : vector<16x128xf32> to vector<128xf32>
    %50 = vector.shape_cast %49 : vector<128xf32> to vector<1x128xf32>
    %51 = arith.addf %45, %50 : vector<1x128xf32>
    %52 = vector.broadcast %18 : i32 to vector<16x128xi32>
    %53 = arith.addi %2, %52 : vector<16x128xi32>
    %54 = vector.broadcast %5 : vector<1x128xi32> to vector<16x128xi32>
    %55 = arith.cmpi eq, %53, %54 : vector<16x128xi32>
    %cst_25 = arith.constant 0.000000e+00 : f32
    %56 = vector.broadcast %cst_25 : f32 to vector<16x128xf32>
    %57 = arith.select %55, %39, %56 : vector<16x128xi1>, vector<16x128xf32>
    %cst_26 = arith.constant dense<0.000000e+00> : vector<128xf32>
    %58 = vector.multi_reduction <add>, %57, %cst_26 [0] : vector<16x128xf32> to vector<128xf32>
    %59 = vector.shape_cast %58 : vector<128xf32> to vector<1x128xf32>
    %60 = arith.addf %16, %59 : vector<1x128xf32>
    %cst_27 = arith.constant dense<0xFF800000> : vector<16xf32>
    %61 = vector.multi_reduction <maximumf>, %39, %cst_27 [1] : vector<16x128xf32> to vector<16xf32>
    %62 = vector.shape_cast %61 : vector<16xf32> to vector<16x1xf32>
    %63 = vector.broadcast %62 : vector<16x1xf32> to vector<16x128xf32>
    %64 = arith.subf %39, %63 : vector<16x128xf32>
    %65 = math.exp %64 : vector<16x128xf32>
    %cst_28 = arith.constant dense<0.000000e+00> : vector<16xf32>
    %66 = vector.multi_reduction <add>, %65, %cst_28 [1] : vector<16x128xf32> to vector<16xf32>
    %67 = vector.shape_cast %66 : vector<16xf32> to vector<16x1xf32>
    %68 = math.log %67 : vector<16x1xf32>
    %69 = arith.addf %62, %68 : vector<16x1xf32>
    %70 = vector.broadcast %32 : vector<16x1xi32> to vector<16x128xi32>
    %71 = arith.cmpi eq, %1, %70 : vector<16x128xi32>
    %cst_29 = arith.constant 0.000000e+00 : f32
    %72 = vector.broadcast %cst_29 : f32 to vector<16x128xf32>
    %73 = arith.select %71, %39, %72 : vector<16x128xi1>, vector<16x128xf32>
    %cst_30 = arith.constant dense<0.000000e+00> : vector<16xf32>
    %74 = vector.multi_reduction <add>, %73, %cst_30 [1] : vector<16x128xf32> to vector<16xf32>
    %75 = vector.shape_cast %74 : vector<16xf32> to vector<16x1xf32>
    %76 = arith.subf %69, %75 : vector<16x1xf32>
    %cst_31 = arith.constant 0.000000e+00 : f32
    %77 = vector.broadcast %cst_31 : f32 to vector<16x1xf32>
    %78 = arith.select %34, %76, %77 : vector<16x1xi1>, vector<16x1xf32>
    %79 = vector.shape_cast %78 : vector<16x1xf32> to vector<1x16x1xf32>
    %cst_32 = arith.constant dense<0.000000e+00> : vector<1xf32>
    %80 = vector.multi_reduction <add>, %79, %cst_32 [1, 2] : vector<1x16x1xf32> to vector<1xf32>
    %81 = vector.shape_cast %80 : vector<1xf32> to vector<1x1x1xf32>
    %82 = vector.extract %81[0, 0, 0] : f32 from vector<1x1x1xf32>
    %83 = arith.addf %cst_12, %82 : f32
    %84 = arith.extui %34 : vector<16x1xi1> to vector<16x1xi32>
    %85 = arith.sitofp %84 : vector<16x1xi32> to vector<16x1xf32>
    %86 = vector.shape_cast %85 : vector<16x1xf32> to vector<1x16x1xf32>
    %cst_33 = arith.constant dense<0.000000e+00> : vector<1xf32>
    %87 = vector.multi_reduction <add>, %86, %cst_33 [1, 2] : vector<1x16x1xf32> to vector<1xf32>
    %88 = vector.shape_cast %87 : vector<1xf32> to vector<1x1x1xf32>
    %89 = vector.extract %88[0, 0, 0] : f32 from vector<1x1x1xf32>
    %90 = arith.addf %cst_13, %89 : f32
    %91 = arith.cmpf oge, %75, %62 : vector<16x1xf32>
    %92 = arith.andi %34, %91 : vector<16x1xi1>
    %cst_34 = arith.constant 1.000000e+00 : f32
    %cst_35 = arith.constant 0.000000e+00 : f32
    %93 = vector.broadcast %cst_34 : f32 to vector<16x1xf32>
    %94 = vector.broadcast %cst_35 : f32 to vector<16x1xf32>
    %95 = arith.select %92, %93, %94 : vector<16x1xi1>, vector<16x1xf32>
    %96 = vector.shape_cast %95 : vector<16x1xf32> to vector<1x16x1xf32>
    %cst_36 = arith.constant dense<0.000000e+00> : vector<1xf32>
    %97 = vector.multi_reduction <add>, %96, %cst_36 [1, 2] : vector<1x16x1xf32> to vector<1xf32>
    %98 = vector.shape_cast %97 : vector<1xf32> to vector<1x1x1xf32>
    %99 = vector.extract %98[0, 0, 0] : f32 from vector<1x1x1xf32>
    %100 = arith.addf %cst_14, %99 : f32
    %c1_i32 = arith.constant 1 : i32
    %101 = math.log %51 : vector<1x128xf32>
    %102 = arith.addf %42, %101 : vector<1x128xf32>
    %103 = arith.subf %102, %60 : vector<1x128xf32>
    %cst_37 = arith.constant 0.000000e+00 : f32
    %104 = vector.broadcast %cst_37 : f32 to vector<1x128xf32>
    %105 = arith.select %7, %103, %104 : vector<1x128xi1>, vector<1x128xf32>
    %106 = vector.shape_cast %105 : vector<1x128xf32> to vector<1x1x128xf32>
    %cst_38 = arith.constant dense<0.000000e+00> : vector<1xf32>
    %107 = vector.multi_reduction <add>, %106, %cst_38 [1, 2] : vector<1x1x128xf32> to vector<1xf32>
    %108 = vector.shape_cast %107 : vector<1xf32> to vector<1x1x1xf32>
    %109 = vector.extract %108[0, 0, 0] : f32 from vector<1x1x1xf32>
    %cst_39 = arith.constant 1.000000e+00 : f32
    %110 = arith.maximumf %13, %cst_39 : f32
    %111 = arith.divf %109, %110 : f32
    %112 = arith.cmpf oge, %60, %42 : vector<1x128xf32>
    %113 = arith.andi %7, %112 : vector<1x128xi1>
    %cst_40 = arith.constant 1.000000e+00 : f32
    %cst_41 = arith.constant 0.000000e+00 : f32
    %114 = vector.broadcast %cst_40 : f32 to vector<1x128xf32>
    %115 = vector.broadcast %cst_41 : f32 to vector<1x128xf32>
    %116 = arith.select %113, %114, %115 : vector<1x128xi1>, vector<1x128xf32>
    %117 = vector.shape_cast %116 : vector<1x128xf32> to vector<1x1x128xf32>
    %cst_42 = arith.constant dense<0.000000e+00> : vector<1xf32>
    %118 = vector.multi_reduction <add>, %117, %cst_42 [1, 2] : vector<1x1x128xf32> to vector<1xf32>
    %119 = vector.shape_cast %118 : vector<1xf32> to vector<1x1x1xf32>
    %120 = vector.extract %119[0, 0, 0] : f32 from vector<1x1x1xf32>
    %cst_43 = arith.constant 1.000000e+00 : f32
    %121 = arith.maximumf %90, %cst_43 : f32
    %122 = arith.divf %83, %121 : f32
    %123 = arith.addf %cst, %111 : f32
    %124 = arith.addf %cst_0, %122 : f32
    %125 = arith.addf %cst_1, %120 : f32
    %126 = arith.addf %cst_2, %13 : f32
    %127 = arith.addf %cst_3, %100 : f32
    %128 = arith.addf %cst_4, %90 : f32
    %c1_i32_44 = arith.constant 1 : i32
    %129 = tpu.iota {dimensions = array<i32: 1>} : vector<8x128xi32>
    %130 = tpu.iota {dimensions = array<i32: 0>} : vector<8x128xi32>
    %c0_i32_45 = arith.constant 0 : i32
    %131 = vector.broadcast %c0_i32_45 : i32 to vector<8x128xi32>
    %132 = arith.cmpi eq, %130, %131 : vector<8x128xi32>
    %cst_46 = arith.constant 0.000000e+00 : f32
    %133 = vector.broadcast %cst_46 : f32 to vector<8x128xf32>
    %c0_i32_47 = arith.constant 0 : i32
    %134 = vector.broadcast %c0_i32_47 : i32 to vector<8x128xi32>
    %135 = arith.cmpi eq, %129, %134 : vector<8x128xi32>
    %136 = arith.andi %132, %135 : vector<8x128xi1>
    %137 = vector.broadcast %123 : f32 to vector<8x128xf32>
    %138 = arith.select %136, %137, %133 : vector<8x128xi1>, vector<8x128xf32>
    %c1_i32_48 = arith.constant 1 : i32
    %139 = vector.broadcast %c1_i32_48 : i32 to vector<8x128xi32>
    %140 = arith.cmpi eq, %129, %139 : vector<8x128xi32>
    %141 = arith.andi %132, %140 : vector<8x128xi1>
    %142 = vector.broadcast %124 : f32 to vector<8x128xf32>
    %143 = arith.select %141, %142, %138 : vector<8x128xi1>, vector<8x128xf32>
    %c2_i32 = arith.constant 2 : i32
    %144 = vector.broadcast %c2_i32 : i32 to vector<8x128xi32>
    %145 = arith.cmpi eq, %129, %144 : vector<8x128xi32>
    %146 = arith.andi %132, %145 : vector<8x128xi1>
    %147 = vector.broadcast %125 : f32 to vector<8x128xf32>
    %148 = arith.select %146, %147, %143 : vector<8x128xi1>, vector<8x128xf32>
    %c3_i32 = arith.constant 3 : i32
    %149 = vector.broadcast %c3_i32 : i32 to vector<8x128xi32>
    %150 = arith.cmpi eq, %129, %149 : vector<8x128xi32>
    %151 = arith.andi %132, %150 : vector<8x128xi1>
    %152 = vector.broadcast %126 : f32 to vector<8x128xf32>
    %153 = arith.select %151, %152, %148 : vector<8x128xi1>, vector<8x128xf32>
    %c4_i32 = arith.constant 4 : i32
    %154 = vector.broadcast %c4_i32 : i32 to vector<8x128xi32>
    %155 = arith.cmpi eq, %129, %154 : vector<8x128xi32>
    %156 = arith.andi %132, %155 : vector<8x128xi1>
    %157 = vector.broadcast %127 : f32 to vector<8x128xf32>
    %158 = arith.select %156, %157, %153 : vector<8x128xi1>, vector<8x128xf32>
    %c5_i32 = arith.constant 5 : i32
    %159 = vector.broadcast %c5_i32 : i32 to vector<8x128xi32>
    %160 = arith.cmpi eq, %129, %159 : vector<8x128xi32>
    %161 = arith.andi %132, %160 : vector<8x128xi1>
    %162 = vector.broadcast %128 : f32 to vector<8x128xf32>
    %163 = arith.select %161, %162, %158 : vector<8x128xi1>, vector<8x128xf32>
    %c0_49 = arith.constant 0 : index
    %c0_50 = arith.constant 0 : index
    %c0_51 = arith.constant 0 : index
    %164 = vector.load %arg6[%c0_49, %c0_50, %c0_51] : memref<1x8x128xf32, #tpu.memory_space<vmem>>, vector<1x8x128xf32>
    %165 = vector.shape_cast %164 : vector<1x8x128xf32> to vector<8x128xf32>
    %166 = vector.shape_cast %163 : vector<8x128xf32> to vector<1x8x128xf32>
    tpu.vector_store %arg6[%c0_49, %c0_50, %c0_51], %166 {strides = array<i32>} : memref<1x8x128xf32, #tpu.memory_space<vmem>>, vector<1x8x128xf32>,
    return
  }
  func.func @transform_0(%arg0: i32, %arg1: memref<1xf32, #tpu.memory_space<smem>>) -> (i32, i32, i32) {
    %c0_i32 = arith.constant 0 : i32
    %c0_i32_0 = arith.constant 0 : i32
    %c0_i32_1 = arith.constant 0 : i32
    return %arg0, %c0_i32, %c0_i32_0 : i32, i32, i32
  }
  func.func @transform_1(%arg0: i32, %arg1: memref<1xf32, #tpu.memory_space<smem>>) -> (i32, i32, i32) {
    %c0_i32 = arith.constant 0 : i32
    %c0_i32_0 = arith.constant 0 : i32
    %c0_i32_1 = arith.constant 0 : i32
    return %arg0, %c0_i32, %c0_i32_0 : i32, i32, i32
  }
  func.func @transform_2(%arg0: i32, %arg1: memref<1xf32, #tpu.memory_space<smem>>) -> (i32, i32, i32) {
    %c0_i32 = arith.constant 0 : i32
    %c0_i32_0 = arith.constant 0 : i32
    %c0_i32_1 = arith.constant 0 : i32
    return %arg0, %c0_i32, %c0_i32_0 : i32, i32, i32
  }
  func.func @transform_3(%arg0: i32, %arg1: memref<1xf32, #tpu.memory_space<smem>>) -> (i32, i32, i32) {
    %c0_i32 = arith.constant 0 : i32
    %c0_i32_0 = arith.constant 0 : i32
    %c0_i32_1 = arith.constant 0 : i32
    return %arg0, %c0_i32, %c0_i32_0 : i32, i32, i32
  }
  func.func @transform_4(%arg0: i32, %arg1: memref<1xf32, #tpu.memory_space<smem>>) -> (i32, i32, i32) {
    %c0_i32 = arith.constant 0 : i32
    %c0_i32_0 = arith.constant 0 : i32
    %c0_i32_1 = arith.constant 0 : i32
    return %arg0, %c0_i32, %c0_i32_0 : i32, i32, i32
  }
}

</mosaic_0001>

<llo_original>
// kernel: tpu_custom_call.1
$region0: #{tpu_custom_call.1}
  #allocation0 [shape = 'u32[]', space=smem, size = 0x4, offset = 0x4, fixed_abs, tag = 'smem constant byte address 0x4 - core index']
  #allocation1 [shape = 'u32[72,128]{1,0:T(1,128)}', space=vmem, size = 0x9000, scoped, tag = 'internal scratch']
  #allocation2 [shape = 's32[1]{0}', space=sflag, size = 0x4, scoped, tag = 'scoped memory for tpu_custom_call.1']
  #allocation3 [shape = 'f32[1]{0:T(128)S(6)}', space=smem, size = 0x200, scoped, tag = 'prefetched SMEM operand 0']
  %s0 = inlined_call_operand.<no memory space> [shape: f32[1], index: 0, kind: input, shape index: {}]
  %s1 = inlined_call_operand.vmem [shape: f32[2,16,32], index: 1, kind: input, shape index: {}]
  %s2 = inlined_call_operand.vmem [shape: f32[2,128,32], index: 2, kind: input, shape index: {}]
  %s3 = inlined_call_operand.vmem [shape: s32[2,1,128], index: 3, kind: input, shape index: {}]
  %s4 = inlined_call_operand.vmem [shape: s32[2,16,1], index: 4, kind: input, shape index: {}]
  %s5 = inlined_call_operand.hbm [shape: f32[2,8,128], index: 5, kind: output, shape index: {}]
  %s6 = sld [smem:[#allocation0]]
  $region49: #{tpu_custom_call.1} parent=0
    _
  %s8 = ssub.s32 1, %s6
  %s9 = scalar_select 0, %s8, %s6
  %10 = sst [smem:[#allocation3]] %s0
  $region1: #{tpu_custom_call.1} parent=0
    #allocation4 [shape = 'u8[8192]{0}', space=vmem, size = 0x2000, scoped, tag = 'output window, operand 0']
    #allocation5 [shape = 's32[2]{0}', space=sflag, size = 0x8, scoped, tag = 'scoped memory for tpu_custom_call.1']
    %11 = vsyncpa [#allocation5], 0
    %s12 = scalar_lea.sflag [#allocation5], 1
    %13 = vsyncpa %s12, 0
    loop: start=0, step=1, limit=4
    $region2: #{tpu_custom_call.1} parent=1 // loop_pre_header
      _
    $region3: #{tpu_custom_call.1} parent=1 // loop_header
      %s15 = sphi 0, %s19
      %p16 = scmp.ge.s32.totalorder %s15, 4
      %s25 = sphi 0, %s27
      %s28 = sphi 0, %s25
      %s29 = sphi 0, %s28
      %s45 = sphi 0, %s29
      %s51 = sphi 0, %s53
      %s54 = sphi 0, %s51
      %s55 = sphi 0, %s54
      %s71 = sphi 0, %s55
      %s77 = sphi 0, %s79
      %s80 = sphi 0, %s77
      %s81 = sphi 0, %s80
      %s97 = sphi 0, %s81
      %s103 = sphi 0, %s105
      %s106 = sphi 0, %s103
      %s107 = sphi 0, %s106
      %s123 = sphi 0, %s107
      %s129 = sphi 0, %s131
      %s132 = sphi 0, %s129
      %s133 = sphi 0, %s132
      %s149 = sphi 0, %s133
    $region4: #{tpu_custom_call.1} parent=1 // loop_header_branch
      %18 = sbr.rel (%p16) target = $region8
    $region5: #{tpu_custom_call.1} parent=1 // loop_body
      %s20 = ssub.s32 %s15, 1
      %s21 = ssub.s32 %s15, 2
      %s22 = sadd.s32 %s15, 1
      %s23 = ssub.s32 %s15, %s22
      %p24 = scmp.eq.s32.totalorder %s23, 0
      %s26 = sadd.s32 %s25, 1
      %s27 = scalar_select %p24, %s25, %s26
      %p30 = pneg %p24
      %p31 = scmp.eq.s32.totalorder %s15, 1
      %p32 = por %p30, %p31
      %p33 = scmp.ne.s32.totalorder %s25, %s28
      %p34 = scmp.eq.s32.totalorder %s15, 0
      %p35 = por %p33, %p34
      %p36 = scmp.ne.s32.totalorder %s25, %s28
      %p37 = scmp.eq.s32.totalorder %s20, 1
      %p38 = por %p36, %p37
      %p39 = scmp.ne.s32.totalorder %s28, %s29
      %p40 = scmp.eq.s32.totalorder %s20, 0
      %p41 = por %p39, %p40
      %p42 = scmp.ne.s32.totalorder %s28, %s29
      %p43 = scmp.eq.s32.totalorder %s21, 1
      %p44 = por %p42, %p43
      %p46 = scmp.ne.s32.totalorder %s29, %s45
      %p47 = scmp.eq.s32.totalorder %s21, 0
      %p48 = por %p46, %p47
      %s49 = ssub.s32 %s15, %s22
      %p50 = scmp.eq.s32.totalorder %s49, 0
      %s52 = sadd.s32 %s51, 1
      %s53 = scalar_select %p50, %s51, %s52
      %p56 = pneg %p50
      %p57 = scmp.eq.s32.totalorder %s15, 1
      %p58 = por %p56, %p57
      %p59 = scmp.ne.s32.totalorder %s51, %s54
      %p60 = scmp.eq.s32.totalorder %s15, 0
      %p61 = por %p59, %p60
      %p62 = scmp.ne.s32.totalorder %s51, %s54
      %p63 = scmp.eq.s32.totalorder %s20, 1
      %p64 = por %p62, %p63
      %p65 = scmp.ne.s32.totalorder %s54, %s55
      %p66 = scmp.eq.s32.totalorder %s20, 0
      %p67 = por %p65, %p66
      %p68 = scmp.ne.s32.totalorder %s54, %s55
      %p69 = scmp.eq.s32.totalorder %s21, 1
      %p70 = por %p68, %p69
      %p72 = scmp.ne.s32.totalorder %s55, %s71
      %p73 = scmp.eq.s32.totalorder %s21, 0
      %p74 = por %p72, %p73
      %s75 = ssub.s32 %s15, %s22
      %p76 = scmp.eq.s32.totalorder %s75, 0
      %s78 = sadd.s32 %s77, 1
      %s79 = scalar_select %p76, %s77, %s78
      %p82 = pneg %p76
      %p83 = scmp.eq.s32.totalorder %s15, 1
      %p84 = por %p82, %p83
      %p85 = scmp.ne.s32.totalorder %s77, %s80
      %p86 = scmp.eq.s32.totalorder %s15, 0
      %p87 = por %p85, %p86
      %p88 = scmp.ne.s32.totalorder %s77, %s80
      %p89 = scmp.eq.s32.totalorder %s20, 1
      %p90 = por %p88, %p89
      %p91 = scmp.ne.s32.totalorder %s80, %s81
      %p92 = scmp.eq.s32.totalorder %s20, 0
      %p93 = por %p91, %p92
      %p94 = scmp.ne.s32.totalorder %s80, %s81
      %p95 = scmp.eq.s32.totalorder %s21, 1
      %p96 = por %p94, %p95
      %p98 = scmp.ne.s32.totalorder %s81, %s97
      %p99 = scmp.eq.s32.totalorder %s21, 0
      %p100 = por %p98, %p99
      %s101 = ssub.s32 %s15, %s22
      %p102 = scmp.eq.s32.totalorder %s101, 0
      %s104 = sadd.s32 %s103, 1
      %s105 = scalar_select %p102, %s103, %s104
      %p108 = pneg %p102
      %p109 = scmp.eq.s32.totalorder %s15, 1
      %p110 = por %p108, %p109
      %p111 = scmp.ne.s32.totalorder %s103, %s106
      %p112 = scmp.eq.s32.totalorder %s15, 0
      %p113 = por %p111, %p112
      %p114 = scmp.ne.s32.totalorder %s103, %s106
      %p115 = scmp.eq.s32.totalorder %s20, 1
      %p116 = por %p114, %p115
      %p117 = scmp.ne.s32.totalorder %s106, %s107
      %p118 = scmp.eq.s32.totalorder %s20, 0
      %p119 = por %p117, %p118
      %p120 = scmp.ne.s32.totalorder %s106, %s107
      %p121 = scmp.eq.s32.totalorder %s21, 1
      %p122 = por %p120, %p121
      %p124 = scmp.ne.s32.totalorder %s107, %s123
      %p125 = scmp.eq.s32.totalorder %s21, 0
      %p126 = por %p124, %p125
      %s127 = ssub.s32 %s15, %s22
      %p128 = scmp.eq.s32.totalorder %s127, 0
      %s130 = sadd.s32 %s129, 1
      %s131 = scalar_select %p128, %s129, %s130
      %p134 = pneg %p128
      %p135 = scmp.eq.s32.totalorder %s15, 1
      %p136 = por %p134, %p135
      %p137 = scmp.ne.s32.totalorder %s129, %s132
      %p138 = scmp.eq.s32.totalorder %s15, 0
      %p139 = por %p137, %p138
      %p140 = scmp.ne.s32.totalorder %s129, %s132
      %p141 = scmp.eq.s32.totalorder %s20, 1
      %p142 = por %p140, %p141
      %p143 = scmp.ne.s32.totalorder %s132, %s133
      %p144 = scmp.eq.s32.totalorder %s20, 0
      %p145 = por %p143, %p144
      %p146 = scmp.ne.s32.totalorder %s132, %s133
      %p147 = scmp.eq.s32.totalorder %s21, 1
      %p148 = por %p146, %p147
      %p150 = scmp.ne.s32.totalorder %s133, %s149
      %p151 = scmp.eq.s32.totalorder %s21, 0
      %p152 = por %p150, %p151
      %p153 = scmp.le.s32.totalorder 1, %s15
      %p154 = scmp.lt.s32.totalorder %s15, 3
      %p155 = pnand %p153, %p154
      %p156 = pneg %p155
      // Predicated region
      $region9: #{tpu_custom_call.1} parent=5 // pred_check
        _
      $region10: #{tpu_custom_call.1} parent=5 // pred_check_branch
        %158 = sbr.rel (%p155) target = $region12
      $region11: #{tpu_custom_call.1} parent=5 // pred_region
        %s159 = ssub.s32 %s15, 1
      $region12: #{tpu_custom_call.1} parent=5 // pred_fallthru
        _
      %p160 = scmp.lt.s32.totalorder %s15, 2
      // Predicated region
      $region13: #{tpu_custom_call.1} parent=5 // pred_check
        %p161 = pneg %p160
      $region14: #{tpu_custom_call.1} parent=5 // pred_check_branch
        %163 = sbr.rel (%p161) target = $region16
      $region15: #{tpu_custom_call.1} parent=5 // pred_region
        // Predicated region
        $region17: #{tpu_custom_call.1} parent=15 // pred_check
          %p164 = pneg %p35
        $region18: #{tpu_custom_call.1} parent=15 // pred_check_branch
          %166 = sbr.rel (%p164) target = $region20
        $region19: #{tpu_custom_call.1} parent=15 // pred_region
          %p167 = scmp.lt.s32.totalorder %s15, 1
          %s168 = scalar_select %p167, %s15, 1
          %s169 = smul.addr %s168, 2
          %s170 = smul.addr %s169, 8
          %s171 = scalar_lea.vmem %s1, %s170
        $region20: #{tpu_custom_call.1} parent=15 // pred_fallthru
          _
        // Predicated region
        $region21: #{tpu_custom_call.1} parent=15 // pred_check
          %p172 = pneg %p61
        $region22: #{tpu_custom_call.1} parent=15 // pred_check_branch
          %174 = sbr.rel (%p172) target = $region24
        $region23: #{tpu_custom_call.1} parent=15 // pred_region
          %p175 = scmp.lt.s32.totalorder %s15, 1
          %s176 = scalar_select %p175, %s15, 1
          %s177 = smul.addr %s176, 16
          %s178 = smul.addr %s177, 8
          %s179 = scalar_lea.vmem %s2, %s178
        $region24: #{tpu_custom_call.1} parent=15 // pred_fallthru
          _
        // Predicated region
        $region25: #{tpu_custom_call.1} parent=15 // pred_check
          %p180 = pneg %p87
        $region26: #{tpu_custom_call.1} parent=15 // pred_check_branch
          %182 = sbr.rel (%p180) target = $region28
        $region27: #{tpu_custom_call.1} parent=15 // pred_region
          %p183 = scmp.lt.s32.totalorder %s15, 1
          %s184 = scalar_select %p183, %s15, 1
          %s185 = scalar_lea.vmem %s3, %s184
        $region28: #{tpu_custom_call.1} parent=15 // pred_fallthru
          _
        // Predicated region
        $region29: #{tpu_custom_call.1} parent=15 // pred_check
          %p186 = pneg %p113
        $region30: #{tpu_custom_call.1} parent=15 // pred_check_branch
          %188 = sbr.rel (%p186) target = $region32
        $region31: #{tpu_custom_call.1} parent=15 // pred_region
          %p189 = scmp.lt.s32.totalorder %s15, 1
          %s190 = scalar_select %p189, %s15, 1
          %s191 = smul.addr %s190, 2
          %s192 = smul.addr %s191, 8
          %s193 = scalar_lea.vmem %s4, %s192
        $region32: #{tpu_custom_call.1} parent=15 // pred_fallthru
          _
      $region16: #{tpu_custom_call.1} parent=5 // pred_fallthru
        _
      %p194 = scmp.le.s32.totalorder 1, %s15
      %p195 = scmp.lt.s32.totalorder %s15, 3
      %p196 = pnand %p194, %p195
      %p197 = pneg %p196
      // Predicated region
      $region33: #{tpu_custom_call.1} parent=5 // pred_check
        _
      $region34: #{tpu_custom_call.1} parent=5 // pred_check_branch
        %199 = sbr.rel (%p196) target = $region36
      $region35: #{tpu_custom_call.1} parent=5 // pred_region
        %s200 = ssub.s32 %s15, 1
        %p201 = scmp.lt.s32.totalorder %s20, 1
        %s202 = scalar_select %p201, %s20, 1
        %s203 = smul.addr %s202, 2
        %s204 = smul.addr %s203, 8
        %s205 = scalar_lea.vmem %s1, %s204
        %p206 = pneg %p41
        %p207 = pneg %p38
        %p208 = scmp.lt.s32.totalorder %s20, 1
        %s209 = scalar_select %p208, %s20, 1
        %s210 = smul.addr %s209, 16
        %s211 = smul.addr %s210, 8
        %s212 = scalar_lea.vmem %s2, %s211
        %p213 = pneg %p67
        %p214 = pneg %p64
        %p215 = scmp.lt.s32.totalorder %s20, 1
        %s216 = scalar_select %p215, %s20, 1
        %s217 = scalar_lea.vmem %s3, %s216
        %p218 = pneg %p93
        %p219 = pneg %p90
        %p220 = scmp.lt.s32.totalorder %s20, 1
        %s221 = scalar_select %p220, %s20, 1
        %s222 = smul.addr %s221, 2
        %s223 = smul.addr %s222, 8
        %s224 = scalar_lea.vmem %s4, %s223
        %p225 = pneg %p119
        %p226 = pneg %p116
        %p227 = pneg %p145
        %p228 = pneg %p142
        %s229 = sand.u32 %s132, 1
        %s230 = scalar_lea.sflag [#allocation5], %s229
        %s231 = sand.u32 %s132, 1
        %s232 = smul.addr %s231, 8
        %s233 = scalar_lea.vmem [#allocation4], %s232
        %p234 = scmp.lt.s32.totalorder %s20, 1
        %s235 = scalar_select %p234, %s20, 1
        %s236 = smul.addr %s235, 2
        %s237 = smul.addr %s236, 8
        %s238 = scalar_lea.vmem %s1, %s237
        %p239 = scmp.lt.s32.totalorder %s20, 1
        %s240 = scalar_select %p239, %s20, 1
        %s241 = smul.addr %s240, 16
        %s242 = smul.addr %s241, 8
        %s243 = scalar_lea.vmem %s2, %s242
        %p244 = scmp.lt.s32.totalorder %s20, 1
        %s245 = scalar_select %p244, %s20, 1
        %s246 = scalar_lea.vmem %s3, %s245
        %p247 = scmp.lt.s32.totalorder %s20, 1
        %s248 = scalar_select %p247, %s20, 1
        %s249 = smul.addr %s248, 2
        %s250 = smul.addr %s249, 8
        %s251 = scalar_lea.vmem %s4, %s250
        %s252 = sld [smem:[#allocation3]]
        %v253 = vlaneseq
        %v254 = vand.u32 %v253, 127
        %v255 = vlaneseq
        %v256 = vshrl.u32 %v255, 7
        %v257 = vadd.s32 %v256, 8
        %v258 = vld [vmem:[%s246] sm:$0x1]
        %vm259 = vcmp.ge.s32.totalorder %v258, 0
        %v260 = vsel %vm259, 1, 0
        %v261 = vcvt.s32.f32 %v260
        %vm262 = vcmask 1040384
        %v263 = vsel %vm262, %v261, 0.0
        %264 = vadd.xlane.f32.xlu0 %v263
        %v265 = vpop.xlane.xlu0 %264
        %v266 = vrot.slane %v265, 4
        %v267 = vadd.f32 %v265, %v266
        %v268 = vrot.slane %v267, 2
        %v269 = vadd.f32 %v267, %v268
        %v270 = vrot.slane %v269, 1
        %v271 = vadd.f32 %v269, %v270
        %s272 = vtos %v271
        %v273 = vld [vmem:[%s238] sm:$0xff]
        %v274 = vld [vmem:[%s238 + $0x8] sm:$0xff]
        %v275 = vld [vmem:[%s243] sm:$0xff]
        %v276 = vld [vmem:[%s243 + $0x8] sm:$0xff]
        %v277 = vld [vmem:[%s243 + $0x10] sm:$0xff]
        %v278 = vld [vmem:[%s243 + $0x18] sm:$0xff]
        %v279 = vld [vmem:[%s243 + $0x20] sm:$0xff]
        %v280 = vld [vmem:[%s243 + $0x28] sm:$0xff]
        %v281 = vld [vmem:[%s243 + $0x30] sm:$0xff]
        %v282 = vld [vmem:[%s243 + $0x38] sm:$0xff]
        %v283 = vld [vmem:[%s243 + $0x40] sm:$0xff]
        %v284 = vld [vmem:[%s243 + $0x48] sm:$0xff]
        %v285 = vld [vmem:[%s243 + $0x50] sm:$0xff]
        %v286 = vld [vmem:[%s243 + $0x58] sm:$0xff]
        %v287 = vld [vmem:[%s243 + $0x60] sm:$0xff]
        %v288 = vld [vmem:[%s243 + $0x68] sm:$0xff]
        %v289 = vld [vmem:[%s243 + $0x70] sm:$0xff]
        %v290 = vld [vmem:[%s243 + $0x78] sm:$0xff]
        %vm291 = vcmask 261120
        %v293 = vsel %vm291, %v273, 0
        %v296 = vsel %vm291, %v274, 0
        %v299 = vsel %vm291, %v275, 0
        %v302 = vsel %vm291, %v276, 0
        %v305 = vsel %vm291, %v277, 0
        %v308 = vsel %vm291, %v278, 0
        %v311 = vsel %vm291, %v279, 0
        %v314 = vsel %vm291, %v280, 0
        %v317 = vsel %vm291, %v281, 0
        %v320 = vsel %vm291, %v282, 0
        %v323 = vsel %vm291, %v283, 0
        %v326 = vsel %vm291, %v284, 0
        %v329 = vsel %vm291, %v285, 0
        %v332 = vsel %vm291, %v286, 0
        %v335 = vsel %vm291, %v287, 0
        %v338 = vsel %vm291, %v288, 0
        %v341 = vsel %vm291, %v289, 0
        %v344 = vsel %vm291, %v290, 0
        %346 = vmatpush.xpose.msra.mxu0 %v344
        %347 = vmatpush.xpose.msra.mxu0 %v341
        %348 = vmatpush.xpose.msra.mxu0 %v338
        %349 = vmatpush.xpose.msra.mxu0 %v335
        %350 = vmatpush.xpose.msra.mxu0 %v332
        %351 = vmatpush.xpose.msra.mxu0 %v329
        %352 = vmatpush.xpose.msra.mxu0 %v326
        %353 = vmatpush.xpose.msra.mxu0 %v323
        %354 = vmatpush.xpose.msra.mxu0 %v320
        %355 = vmatpush.xpose.msra.mxu0 %v317
        %356 = vmatpush.xpose.msra.mxu0 %v314
        %357 = vmatpush.xpose.msra.mxu0 %v311
        %358 = vmatpush.xpose.msra.mxu0 %v308
        %359 = vmatpush.xpose.msra.mxu0 %v305
        %360 = vmatpush.xpose.msra.mxu0 %v302
        %361 = vmatpush.xpose.msra.mxu0 %v299
        %362 = vmatmul.f32.gmra.mxu0 %v293
        %v363 = vpop.f32.mrf.mxu0
        %v364 = vadd.f32 0.0, %v363
        %365 = vmatmul.f32.gmra.mxu0 %v296
        %v366 = vpop.f32.mrf.mxu0
        %v367 = vadd.f32 0.0, %v366
        %368 = vdwg.mxu0
        %v369 = vstv %s252
        %v370 = vmul.f32 %v369, %v364
        %v371 = vmul.f32 %v369, %v367
        %v372 = vld [vmem:[%s251] sm:$0xff]
        %v373 = vld [vmem:[%s251 + $0x8] sm:$0xff]
        %vm374 = vcmp.ge.s32.totalorder %v372, 0
        %vm375 = vcmp.ge.s32.totalorder %v373, 0
        %v376 = vsel %vm374, 1, 0
        %v377 = vsel %vm375, 1, 0
        %378 = vset.pattern.permute.xlu0 0
        %379 = vperm.xlu0 %378, %v376
        %v380 = vpop.permute.xlu0 %379
        %381 = vset.pattern.permute.xlu0 0
        %382 = vperm.xlu0 %381, %v377
        %v383 = vpop.permute.xlu0 %382
        %vm384 = vcmp.eq.s32.totalorder %v380, 1
        %vm385 = vcmp.eq.s32.totalorder %v383, 1
        %v386 = vperm.slane %v260, 0
        %vm387 = vcmp.eq.s32.totalorder %v386, 1
        %vm388 = vmand %vm384, %vm387
        %vm389 = vmand %vm385, %vm387
        %v390 = vsel %vm388, %v370, -1e+30
        %v391 = vsel %vm389, %v371, -1e+30
        %v392 = vmax.f32 %v390, %v391
        %v393 = vrot.slane %v392, 4
        %v394 = vmax.f32 %v392, %v393
        %v395 = vrot.slane %v394, 2
        %v396 = vmax.f32 %v394, %v395
        %v397 = vrot.slane %v396, 1
        %v398 = vmax.f32 %v396, %v397
        %v399 = vmax.f32 %v398, -1e+30
        %v400 = vsub.f32 -1e+30, %v399
        %v401 = vmul.f32 %v400, 1.442695
        %v402 = vpow.pop %v401
        %v403 = vmul.f32 %v402, 0.0
        %v404 = vsub.f32 %v390, %v399
        %v405 = vsub.f32 %v391, %v399
        %v406 = vmul.f32 %v404, 1.442695
        %v407 = vpow.pop %v406
        %v408 = vmul.f32 %v405, 1.442695
        %v409 = vpow.pop %v408
        %v410 = vadd.f32 %v407, %v409
        %v411 = vrot.slane %v410, 4
        %v412 = vadd.f32 %v410, %v411
        %v413 = vrot.slane %v412, 2
        %v414 = vadd.f32 %v412, %v413
        %v415 = vrot.slane %v414, 1
        %v416 = vadd.f32 %v414, %v415
        %v417 = vadd.f32 %v403, %v416
        %v418 = vstv 0
        %v419 = vadd.s32 %v256, %v418
        %v420 = vadd.s32 %v257, %v418
        %v421 = vperm.slane %v258, 0
        %vm422 = vcmp.eq.s32.totalorder %v419, %v421
        %vm423 = vcmp.eq.s32.totalorder %v420, %v421
        %v424 = vsel %vm422, %v390, 0.0
        %v425 = vsel %vm423, %v391, 0.0
        %v426 = vadd.f32 %v424, %v425
        %v427 = vrot.slane %v426, 4
        %v428 = vadd.f32 %v426, %v427
        %v429 = vrot.slane %v428, 2
        %v430 = vadd.f32 %v428, %v429
        %v431 = vrot.slane %v430, 1
        %v432 = vadd.f32 %v430, %v431
        %v433 = vadd.f32 %v432, 0.0
        %434 = vmax.xlane.f32.xlu0 %v390
        %v435 = vpop.xlane.xlu0 %434
        %436 = vmax.xlane.f32.xlu0 %v391
        %v437 = vpop.xlane.xlu0 %436
        %v438 = vsub.f32 %v390, %v435
        %v439 = vsub.f32 %v391, %v437
        %v440 = vmul.f32 %v438, 1.442695
        %v441 = vpow.pop %v440
        %v442 = vmul.f32 %v439, 1.442695
        %v443 = vpow.pop %v442
        %444 = vadd.xlane.f32.xlu0 %v441
        %v445 = vpop.xlane.xlu0 %444
        %446 = vadd.xlane.f32.xlu0 %v443
        %v447 = vpop.xlane.xlu0 %446
        %v448 = vlog2.pop %v445
        %v449 = vmul.f32 %v448, 0.6931472
        %v450 = vlog2.pop %v447
        %v451 = vmul.f32 %v450, 0.6931472
        %v452 = vadd.f32 %v435, %v449
        %v453 = vadd.f32 %v437, %v451
        %454 = vset.pattern.permute.xlu0 0
        %455 = vperm.xlu0 %454, %v372
        %v456 = vpop.permute.xlu0 %455
        %457 = vset.pattern.permute.xlu0 0
        %458 = vperm.xlu0 %457, %v373
        %v459 = vpop.permute.xlu0 %458
        %vm460 = vcmp.eq.s32.totalorder %v254, %v456
        %vm461 = vcmp.eq.s32.totalorder %v254, %v459
        %v462 = vsel %vm460, %v390, 0.0
        %v463 = vsel %vm461, %v391, 0.0
        %464 = vadd.xlane.f32.xlu0 %v462
        %v465 = vpop.xlane.xlu0 %464
        %466 = vadd.xlane.f32.xlu0 %v463
        %v467 = vpop.xlane.xlu0 %466
        %v468 = vsub.f32 %v452, %v465
        %v469 = vsub.f32 %v453, %v467
        %v470 = vsel %vm374, %v468, 0.0
        %v471 = vsel %vm375, %v469, 0.0
        %vm472 = vcmask 7168
        %v473 = vsel %vm472, %v470, 0.0
        %v474 = vsel %vm472, %v471, 0.0
        %v475 = vadd.f32 %v473, %v474
        %476 = vadd.xlane.f32.xlu0 %v475
        %v477 = vpop.xlane.xlu0 %476
        %v478 = vrot.slane %v477, 4
        %v479 = vadd.f32 %v477, %v478
        %v480 = vrot.slane %v479, 2
        %v481 = vadd.f32 %v479, %v480
        %v482 = vrot.slane %v481, 1
        %v483 = vadd.f32 %v481, %v482
        %s484 = vtos %v483
        %s485 = sadd.f32 %s484, 0.0
        %v486 = vcvt.s32.f32 %v376
        %v487 = vcvt.s32.f32 %v377
        %v488 = vsel %vm472, %v486, 0.0
        %v489 = vsel %vm472, %v487, 0.0
        %v490 = vadd.f32 %v488, %v489
        %491 = vadd.xlane.f32.xlu0 %v490
        %v492 = vpop.xlane.xlu0 %491
        %v493 = vrot.slane %v492, 4
        %v494 = vadd.f32 %v492, %v493
        %v495 = vrot.slane %v494, 2
        %v496 = vadd.f32 %v494, %v495
        %v497 = vrot.slane %v496, 1
        %v498 = vadd.f32 %v496, %v497
        %s499 = vtos %v498
        %s500 = sadd.f32 %s499, 0.0
        %vm501 = vcmp.ge.f32.partialorder %v465, %v435
        %vm502 = vcmp.ge.f32.partialorder %v467, %v437
        %vm503 = vmand %vm374, %vm501
        %vm504 = vmand %vm375, %vm502
        %v505 = vsel %vm503, 1.0, 0.0
        %v506 = vsel %vm504, 1.0, 0.0
        %v507 = vsel %vm472, %v505, 0.0
        %v508 = vsel %vm472, %v506, 0.0
        %v509 = vadd.f32 %v507, %v508
        %510 = vadd.xlane.f32.xlu0 %v509
        %v511 = vpop.xlane.xlu0 %510
        %v512 = vrot.slane %v511, 4
        %v513 = vadd.f32 %v511, %v512
        %v514 = vrot.slane %v513, 2
        %v515 = vadd.f32 %v513, %v514
        %v516 = vrot.slane %v515, 1
        %v517 = vadd.f32 %v515, %v516
        %s518 = vtos %v517
        %s519 = sadd.f32 %s518, 0.0
        %v520 = vlog2.pop %v417
        %v521 = vmul.f32 %v520, 0.6931472
        %v522 = vadd.f32 %v399, %v521
        %v523 = vsub.f32 %v522, %v433
        %v524 = vsel %vm259, %v523, 0.0
        %v525 = vsel %vm262, %v524, 0.0
        %526 = vadd.xlane.f32.xlu0 %v525
        %v527 = vpop.xlane.xlu0 %526
        %v528 = vrot.slane %v527, 4
        %v529 = vadd.f32 %v527, %v528
        %v530 = vrot.slane %v529, 2
        %v531 = vadd.f32 %v529, %v530
        %v532 = vrot.slane %v531, 1
        %v533 = vadd.f32 %v531, %v532
        %s534 = vtos %v533
        %s535 = smax.f32 %s272, 1.0
        %v536 = vstv %s535
        %v537 = vrcp.pop %v536
        %v538 = vmul.f32 %v536, %v537
        %v539 = vsub.f32 1.0, %v538
        %v540 = vmul.f32 %v537, %v539
        %v541 = vadd.f32 %v537, %v540
        %vm542 = vweird.f32 %v536
        %vm543 = vweird.f32 %v537
        %vm544 = vmor %vm542, %vm543
        %v545 = vsel %vm544, %v537, %v541
        %v546 = vand.u32 2147483647, %v536
        %vm547 = vcmp.eq.f32.partialorder %v546, 8.507059e+37
        %v548 = vand.u32 %v536, 2147483648
        %v549 = vor.u32 1.1754944e-38, %v548
        %v550 = vsel %vm547, %v549, %v545
        %s551 = vtos %v550
        %s552 = smul.f32 %s534, %s551
        %vm553 = vcmp.ge.f32.partialorder %v433, %v399
        %vm554 = vmand %vm259, %vm553
        %v555 = vsel %vm554, 1.0, 0.0
        %v556 = vsel %vm262, %v555, 0.0
        %557 = vadd.xlane.f32.xlu0 %v556
        %v558 = vpop.xlane.xlu0 %557
        %v559 = vrot.slane %v558, 4
        %v560 = vadd.f32 %v558, %v559
        %v561 = vrot.slane %v560, 2
        %v562 = vadd.f32 %v560, %v561
        %v563 = vrot.slane %v562, 1
        %v564 = vadd.f32 %v562, %v563
        %s565 = vtos %v564
        %s566 = smax.f32 %s500, 1.0
        %v567 = vstv %s566
        %v568 = vrcp.pop %v567
        %v569 = vmul.f32 %v567, %v568
        %v570 = vsub.f32 1.0, %v569
        %v571 = vmul.f32 %v568, %v570
        %v572 = vadd.f32 %v568, %v571
        %vm573 = vweird.f32 %v567
        %vm574 = vweird.f32 %v568
        %vm575 = vmor %vm573, %vm574
        %v576 = vsel %vm575, %v568, %v572
        %v577 = vand.u32 2147483647, %v567
        %vm578 = vcmp.eq.f32.partialorder %v577, 8.507059e+37
        %v579 = vand.u32 %v567, 2147483648
        %v580 = vor.u32 1.1754944e-38, %v579
        %v581 = vsel %vm578, %v580, %v576
        %s582 = vtos %v581
        %s583 = smul.f32 %s485, %s582
        %s584 = sadd.f32 %s552, 0.0
        %s585 = sadd.f32 %s583, 0.0
        %s586 = sadd.f32 %s565, 0.0
        %s587 = sadd.f32 %s272, 0.0
        %s588 = sadd.f32 %s519, 0.0
        %s589 = sadd.f32 %s500, 0.0
        %vm590 = vcmp.eq.s32.totalorder %v256, 0
        %vm591 = vcmp.eq.s32.totalorder %v254, 0
        %vm592 = vmand %vm590, %vm591
        %v593 = vstv %s584
        %v594 = vsel %vm592, %v593, 0.0
        %vm595 = vcmp.eq.s32.totalorder %v254, 1
        %vm596 = vmand %vm590, %vm595
        %v597 = vstv %s585
        %v598 = vsel %vm596, %v597, %v594
        %vm599 = vcmp.eq.s32.totalorder %v254, 2
        %vm600 = vmand %vm590, %vm599
        %v601 = vstv %s586
        %v602 = vsel %vm600, %v601, %v598
        %vm603 = vcmp.eq.s32.totalorder %v254, 3
        %vm604 = vmand %vm590, %vm603
        %v605 = vstv %s587
        %v606 = vsel %vm604, %v605, %v602
        %vm607 = vcmp.eq.s32.totalorder %v254, 4
        %vm608 = vmand %vm590, %vm607
        %v609 = vstv %s588
        %v610 = vsel %vm608, %v609, %v606
        %vm611 = vcmp.eq.s32.totalorder %v254, 5
        %vm612 = vmand %vm590, %vm611
        %v613 = vstv %s589
        %v614 = vsel %vm612, %v613, %v610
        %615 = vst [vmem:[%s233] sm:$0xff] %v614
        %s616 = sand.u32 %s132, 1
        %s617 = scalar_lea.sflag [#allocation5], %s616
        %s618 = sand.u32 %s132, 1
        %s619 = smul.addr %s618, 8
        %s620 = scalar_lea.vmem [#allocation4], %s619
        // Predicated region
        $region37: #{tpu_custom_call.1} parent=35 // pred_check
          %p621 = pneg %p142
        $region38: #{tpu_custom_call.1} parent=35 // pred_check_branch
          %623 = sbr.rel (%p621) target = $region40
        $region39: #{tpu_custom_call.1} parent=35 // pred_region
          %625 = vsyncadd %s617, 0
          %s626 = smul.addr %s20, 8
          %s627 = scalar_lea.hbm %s5, %s626
          %s629 = sshll.u32 %s620, 4
          %s630 = int_to_ptr.vmem [resolvable:$true] %s629
          %s631 = sshll.u32 %s627, 4
          %s632 = int_to_ptr.hbm [resolvable:$true] %s631
          %634 = dma.vmem_to_hbm [thread:$0]  %s630, 128, %s632, %s617
        $region40: #{tpu_custom_call.1} parent=35 // pred_fallthru
          _
      $region36: #{tpu_custom_call.1} parent=5 // pred_fallthru
        _
      %p635 = scmp.le.s32.totalorder 2, %s15
      // Predicated region
      $region41: #{tpu_custom_call.1} parent=5 // pred_check
        %p636 = pneg %p635
      $region42: #{tpu_custom_call.1} parent=5 // pred_check_branch
        %638 = sbr.rel (%p636) target = $region44
      $region43: #{tpu_custom_call.1} parent=5 // pred_region
        %s639 = ssub.s32 %s15, 2
        // Predicated region
        $region45: #{tpu_custom_call.1} parent=43 // pred_check
          %p640 = pneg %p148
        $region46: #{tpu_custom_call.1} parent=43 // pred_check_branch
          %642 = sbr.rel (%p640) target = $region48
        $region47: #{tpu_custom_call.1} parent=43 // pred_region
          %s643 = sand.u32 %s133, 1
          %s644 = scalar_lea.sflag [#allocation5], %s643
          %s645 = sand.u32 %s133, 1
          %s646 = smul.addr %s645, 8
          %s647 = scalar_lea.vmem [#allocation4], %s646
          %649 = dma.done %s644, 128
        $region48: #{tpu_custom_call.1} parent=43 // pred_fallthru
          _
      $region44: #{tpu_custom_call.1} parent=5 // pred_fallthru
        _
    $region6: #{tpu_custom_call.1} parent=1 // loop_footer
      %s19 = sadd.s32 1, %s15
    $region7: #{tpu_custom_call.1} parent=1 // loop_footer_branch
      %14 = sbr.rel target = $region3
    $region8: #{tpu_custom_call.1} parent=1 // loop_exit
      _
    %650 = vsyncpa [#allocation5], 1
    %s651 = scalar_lea.sflag [#allocation5], 1
    %652 = vsyncpa %s651, 1

</llo_original>
